<compile_context>
chip_gen: v7x
topology: tpu7x:2x2x1
jax: 0.10.0
libtpu: 0.0.40
codegen_flags: <defaults>
</compile_context>

<pallas_src>
import jax
import jax.numpy as jnp
from jax.experimental import pallas as pl
from jax.experimental.pallas import tpu as pltpu

SPLIT_SIZES = (16, 48, 8)                    # torch.split(x1, [16, 48, 8], dim=1)
CAT_ORDER = tuple(range(len(SPLIT_SIZES)))   # cat([v1[i] for i in range(len(v1))], 1)


def _channel_spans():
    """Trace-time: maximal contiguous (out_start, in_start, length) channel runs."""
    starts, s = [], 0
    for sz in SPLIT_SIZES:
        starts.append(s)
        s += sz
    spans, out = [], 0
    for i in CAT_ORDER:
        in_start, ln = starts[i], SPLIT_SIZES[i]
        if (spans
                and spans[-1][0] + spans[-1][2] == out
                and spans[-1][1] + spans[-1][2] == in_start):
            o0, i0, l0 = spans[-1]
            spans[-1] = (o0, i0, l0 + ln)     # merge contiguous run
        else:
            spans.append((out, in_start, ln))
        out += ln
    return spans


def _make_copy_kernel(spans, C):
    """Kernel issuing one HBM->HBM DMA per contiguous channel span.

    N and HW stay folded into each span's (strided) DMA, so the descriptor
    count is len(spans) (<= 3) and each burst is as large as possible.
    """
    if len(spans) == 1:
        o0, i0, ln = spans[0]

        def kernel_single(x_hbm, o_hbm, sem):
            if ln == C and o0 == 0 and i0 == 0:
                src, dst = x_hbm, o_hbm          # whole-array copy
            else:
                src = x_hbm.at[:, pl.ds(i0, ln), :]
                dst = o_hbm.at[:, pl.ds(o0, ln), :]
            cp = pltpu.make_async_copy(src, dst, sem)
            cp.start()
            cp.wait()

        return kernel_single, [pltpu.SemaphoreType.DMA(())]

    def kernel_multi(x_hbm, o_hbm, sems):
        copies = []
        for k, (o0, i0, ln) in enumerate(spans):
            src = x_hbm.at[:, pl.ds(i0, ln), :]
            dst = o_hbm.at[:, pl.ds(o0, ln), :]
            cp = pltpu.make_async_copy(src, dst, sems.at[k])
            cp.start()
            copies.append(cp)
        for cp in copies:            # overlap all span copies, then drain
            cp.wait()

    return kernel_multi, [pltpu.SemaphoreType.DMA((len(spans),))]


def split_cat(x, *, force_kernel=False):
    """x: (N, C, H, W) with C == sum(SPLIT_SIZES). Returns cat(split(x, SPLIT_SIZES, 1), 1).

    force_kernel=True bypasses the identity fast path so the Pallas copy
    kernel is actually exercised (useful for testing / when a fresh buffer
    must be materialized).
    """
    N, C, H, W = x.shape
    assert C == sum(SPLIT_SIZES), (
        f"split({list(SPLIT_SIZES)}, dim=1) requires C == {sum(SPLIT_SIZES)}, got {C}")

    spans = _channel_spans()

    # ---- FAST PATH: split + cat in original order == identity. No kernel, no copy.
    if not force_kernel and len(spans) == 1 and spans[0] == (0, 0, C):
        return x

    HW = H * W
    x3 = x.reshape(N, C, HW)
    kernel, scratch = _make_copy_kernel(spans, C)

    itemsize = jnp.dtype(x.dtype).itemsize
    bytes_accessed = 2 * N * C * HW * itemsize   # read + write of the whole array

    out3 = pl.pallas_call(
        kernel,
        out_shape=jax.ShapeDtypeStruct((N, C, HW), x.dtype),
        in_specs=[pl.BlockSpec(memory_space=pl.ANY)],   # stay in HBM, no auto-DMA
        out_specs=pl.BlockSpec(memory_space=pl.ANY),
        scratch_shapes=scratch,
        cost_estimate=pl.CostEstimate(
            flops=0, transcendentals=0, bytes_accessed=bytes_accessed),
    )(x3)
    return out3.reshape(N, C, H, W)


if __name__ == "__main__":
    key = jax.random.PRNGKey(0)
    # C must equal sum(SPLIT_SIZES) = 72 for split([16,48,8], dim=1) to be valid.
    x = jax.random.normal(key, (2, 72, 4, 4), dtype=jnp.float32)

    # Reference: split along channels then concatenate back -> identity.
    ref = jnp.concatenate([x[:, :16], x[:, 16:64], x[:, 64:72]], axis=1)

    # 1) Default path: identity fast path (zero-copy).
    out_fast = jax.block_until_ready(split_cat(x))
    assert out_fast.shape == ref.shape and out_fast.dtype == ref.dtype
    assert bool(jnp.allclose(out_fast, ref))

    # 2) Kernel path: exercise the Pallas HBM->HBM DMA copy once.
    out_kernel = jax.block_until_ready(split_cat(x, force_kernel=True))
    assert out_kernel.shape == ref.shape and out_kernel.dtype == ref.dtype
    assert bool(jnp.allclose(out_kernel, ref))

    print("KERNEL_OK")
</pallas_src>

<mosaic_0001>
module attributes {stable_mosaic.version = 11 : i64} {
  func.func @kernel_single(%arg0: memref<2x72x16xf32, #tpu.memory_space<any>>, %arg1: memref<2x72x16xf32, #tpu.memory_space<any>>, %arg2: memref<!tpu.dma_semaphore, #tpu.memory_space<semaphore_mem>>) attributes {dimension_semantics = [], scalar_prefetch = 0 : i64, scratch_operands = 1 : i64, tpu.core_type = #tpu.core_type<tc>} {
    tpu.enqueue_dma source(%arg0 : memref<2x72x16xf32, #tpu.memory_space<any>>) target(%arg1 : memref<2x72x16xf32, #tpu.memory_space<any>>) target_semaphore(%arg2 : memref<!tpu.dma_semaphore, #tpu.memory_space<semaphore_mem>>)
    tpu.wait_dma2 semaphore(%arg2 : memref<!tpu.dma_semaphore, #tpu.memory_space<semaphore_mem>>) src(%arg0 : memref<2x72x16xf32, #tpu.memory_space<any>>) dst(%arg1 : memref<2x72x16xf32, #tpu.memory_space<any>>)
    return
  }
}

</mosaic_0001>

<llo_original>
// kernel: tpu_custom_call.1
$region0: #{tpu_custom_call.1}
  #allocation0 [shape = 'u32[]', space=smem, size = 0x4, offset = 0x4, fixed_abs, tag = 'smem constant byte address 0x4 - core index']
  #allocation1 [shape = 'u32[144,128]{1,0:T(1,128)}', space=vmem, size = 0x12000, scoped, tag = 'internal scratch']
  #allocation2 [shape = 's32[1]{0}', space=sflag, size = 0x4, scoped, tag = 'scratch operand']
  #allocation3 [shape = 's32[]', space=sflag, size = 0x4, offset = 0, fixed_abs, tag = 'sflag constant byte address 0x0 - dummy sync flag']
  %s0 = inlined_call_operand.vmem [shape: f32[2,72,16], index: 0, kind: input, shape index: {}]
  %s1 = inlined_call_operand.vmem [shape: f32[2,72,16], index: 1, kind: output, shape index: {}]
  %s2 = sld [smem:[#allocation0]]
  $region36: #{tpu_custom_call.1} parent=0
    _
  %s4 = ssub.s32 1, %s2
  %s5 = scalar_select 0, %s4, %s2
  %p7 = scmp.lt.u32.totalorder 144, 8
  %p8 = pneg %p7
  // Predicated region
  $region2: #{tpu_custom_call.1} parent=0 // pred_check
    _
  $region3: #{tpu_custom_call.1} parent=0 // pred_check_branch
    %10 = sbr.rel (%p7) target = $region5
  $region4: #{tpu_custom_call.1} parent=0 // pred_region
    %s25 = sand.u32 144, 7
    %p26 = scmp.eq.s32.totalorder %s25, 0
    // Predicated region
    $region17: #{tpu_custom_call.1} parent=4 // pred_check
      %p27 = pneg %p26
    $region18: #{tpu_custom_call.1} parent=4 // pred_check_branch
      %29 = sbr.rel (%p27) target = $region20
    $region19: #{tpu_custom_call.1} parent=4 // pred_region
      loop: start=0, step=1, limit=1
      $region21: #{tpu_custom_call.1} parent=19 // loop_pre_header
        _
      $region22: #{tpu_custom_call.1} parent=19 // loop_header
        %s31 = sphi 0, %s35
        %p32 = scmp.ge.s32.totalorder %s31, 1
        %s36 = sphi %s0, %s0
        %s37 = sphi %s1, %s1
      $region23: #{tpu_custom_call.1} parent=19 // loop_header_branch
        %34 = sbr.rel (%p32) target = $region27
      $region24: #{tpu_custom_call.1} parent=19 // loop_body
        %v38 = vld [vmem:[%s36] sm:$0xff]
        %39 = vst [vmem:[%s37] sm:$0xff] %v38
        %v40 = vld [vmem:[%s36 + $0x8] sm:$0xff]
        %41 = vst [vmem:[%s37 + $0x8] sm:$0xff] %v40
        %v42 = vld [vmem:[%s36 + $0x10] sm:$0xff]
        %43 = vst [vmem:[%s37 + $0x10] sm:$0xff] %v42
        %v44 = vld [vmem:[%s36 + $0x18] sm:$0xff]
        %45 = vst [vmem:[%s37 + $0x18] sm:$0xff] %v44
        %v46 = vld [vmem:[%s36 + $0x20] sm:$0xff]
        %47 = vst [vmem:[%s37 + $0x20] sm:$0xff] %v46
        %v48 = vld [vmem:[%s36 + $0x28] sm:$0xff]
        %49 = vst [vmem:[%s37 + $0x28] sm:$0xff] %v48
        %v50 = vld [vmem:[%s36 + $0x30] sm:$0xff]
        %51 = vst [vmem:[%s37 + $0x30] sm:$0xff] %v50
        %v52 = vld [vmem:[%s36 + $0x38] sm:$0xff]
        %53 = vst [vmem:[%s37 + $0x38] sm:$0xff] %v52
        %v54 = vld [vmem:[%s36 + $0x40] sm:$0xff]
        %55 = vst [vmem:[%s37 + $0x40] sm:$0xff] %v54
        %v56 = vld [vmem:[%s36 + $0x48] sm:$0xff]
        %57 = vst [vmem:[%s37 + $0x48] sm:$0xff] %v56
        %v58 = vld [vmem:[%s36 + $0x50] sm:$0xff]
        %59 = vst [vmem:[%s37 + $0x50] sm:$0xff] %v58
        %v60 = vld [vmem:[%s36 + $0x58] sm:$0xff]
        %61 = vst [vmem:[%s37 + $0x58] sm:$0xff] %v60
        %v62 = vld [vmem:[%s36 + $0x60] sm:$0xff]
        %63 = vst [vmem:[%s37 + $0x60] sm:$0xff] %v62
        %v64 = vld [vmem:[%s36 + $0x68] sm:$0xff]
        %65 = vst [vmem:[%s37 + $0x68] sm:$0xff] %v64
        %v66 = vld [vmem:[%s36 + $0x70] sm:$0xff]
        %67 = vst [vmem:[%s37 + $0x70] sm:$0xff] %v66
        %v68 = vld [vmem:[%s36 + $0x78] sm:$0xff]
        %69 = vst [vmem:[%s37 + $0x78] sm:$0xff] %v68
        %v70 = vld [vmem:[%s36 + $0x80] sm:$0xff]
        %71 = vst [vmem:[%s37 + $0x80] sm:$0xff] %v70
        %v72 = vld [vmem:[%s36 + $0x88] sm:$0xff]
        %73 = vst [vmem:[%s37 + $0x88] sm:$0xff] %v72
      $region25: #{tpu_custom_call.1} parent=19 // loop_footer
        %s35 = sadd.s32 1, %s31
      $region26: #{tpu_custom_call.1} parent=19 // loop_footer_branch
        %30 = sbr.rel target = $region22
      $region27: #{tpu_custom_call.1} parent=19 // loop_exit
        _
    $region20: #{tpu_custom_call.1} parent=4 // pred_fallthru
      _
    %p74 = pneg %p26
    // Predicated region
    $region28: #{tpu_custom_call.1} parent=4 // pred_check
      _
    $region29: #{tpu_custom_call.1} parent=4 // pred_check_branch
      %76 = sbr.rel (%p26) target = $region31
    $region30: #{tpu_custom_call.1} parent=4 // pred_region
      %s77 = sand.u32 144, 7
    $region31: #{tpu_custom_call.1} parent=4 // pred_fallthru
      _
  $region5: #{tpu_custom_call.1} parent=0 // pred_fallthru
    _
  // Predicated region
  $region6: #{tpu_custom_call.1} parent=0 // pred_check
    %p11 = pneg %p7
  $region7: #{tpu_custom_call.1} parent=0 // pred_check_branch
    %13 = sbr.rel (%p11) target = $region9
  $region8: #{tpu_custom_call.1} parent=0 // pred_region
    %s14 = sshllo.u32 0, 144
    loop: start=0, step=1, limit=1
    $region10: #{tpu_custom_call.1} parent=8 // loop_pre_header
      _
    $region11: #{tpu_custom_call.1} parent=8 // loop_header
      %s16 = sphi 0, %s20
      %p17 = scmp.ge.s32.totalorder %s16, 1
      %s21 = sphi %s0, %s0
      %s22 = sphi %s1, %s1
    $region12: #{tpu_custom_call.1} parent=8 // loop_header_branch
      %19 = sbr.rel (%p17) target = $region16
    $region13: #{tpu_custom_call.1} parent=8 // loop_body
      %v23 = vld [vmem:[%s21] sm:%s14]
      %24 = vst [vmem:[%s22] sm:%s14] %v23
    $region14: #{tpu_custom_call.1} parent=8 // loop_footer
      %s20 = sadd.s32 1, %s16
    $region15: #{tpu_custom_call.1} parent=8 // loop_footer_branch
      %15 = sbr.rel target = $region11
    $region16: #{tpu_custom_call.1} parent=8 // loop_exit
      _
  $region9: #{tpu_custom_call.1} parent=0 // pred_fallthru
    _
  // Predicated region
  $region32: #{tpu_custom_call.1} parent=0 // pred_check
    _
  $region33: #{tpu_custom_call.1} parent=0 // pred_check_branch
    %80 = sbr.rel (0) target = $region35
  $region34: #{tpu_custom_call.1} parent=0 // pred_region
    %81 = vsyncadd [#allocation2], 2304
  $region35: #{tpu_custom_call.1} parent=0 // pred_fallthru
    _
  %s82 = smul.u32 2, 72
  %s83 = smul.u32 %s82, 1
  %s84 = sshll.u32 %s83, 4
  %85 = dma.done [#allocation2], %s84
  %86 = vsyncmov [#allocation2]
  %s87 = vpop.sfrf %86
  %p88 = scmp.eq.s32.totalorder %s87, 0
  %p89 = pneg %p88
  %91 = shalt.err (%p89)

</llo_original>
